<compile_context>
chip_gen: v7x
topology: tpu7x:2x2x1
jax: 0.10.0
libtpu: 0.0.40
codegen_flags: <defaults>
</compile_context>

<pallas_src>
from typing import List

import jax
import jax.numpy as jnp
import numpy as np
from jax.experimental import pallas as pl
from jax.experimental.pallas import tpu as pltpu


# ------------------------------ kernel body ------------------------------

def _make_kernel(n_per_group, row_offsets, H, concat_self):
    """All shapes / offsets are static Python values baked into the body."""
    G = len(n_per_group)

    def kernel(*refs):
        if concat_self:
            xs_ref, ent_ref, ws_ref, we_ref, bias_ref, out_ref = refs
        else:
            ent_ref, we_ref, bias_ref, out_ref = refs

        # ---- entity contribution: ONE MXU matmul over the packed slab ----
        # ent_ref block: (1, total_n, sumK); weight: (sumK, H) stacked over groups.
        ent_proj = jnp.dot(ent_ref[0], we_ref[...],
                           preferred_element_type=jnp.float32)        # (total_n, H)

        # ---- self contribution + bias: ONCE per batch row, not per entity ----
        if concat_self:
            bi = pl.program_id(0)
            sp = jnp.dot(xs_ref[pl.ds(bi, 1), :], ws_ref[...],
                         preferred_element_type=jnp.float32)          # (1, G*H)
            sp = sp + bias_ref[...]                                   # f32 add (exact)
        else:
            sp = bias_ref[...]                                        # (1, G*H)

        # ---- batched epilogue: broadcast self/bias over each group's rows,
        #      one Swish over the whole block, ONE full-block store ----
        self_rows = jnp.concatenate(
            [jnp.broadcast_to(sp[:, g * H:(g + 1) * H], (n_per_group[g], H))
             for g in range(G)],
            axis=0)                                                    # (total_n, H)
        y = ent_proj + self_rows
        out_ref[...] = (y * jax.nn.sigmoid(y)).astype(out_ref.dtype)[None]

    return kernel


# ---------------------------- module equivalent ----------------------------

class EntityEmbeddingsPallas:
    def __init__(
        self,
        x_self_size: int,
        entity_sizes: List[int],
        entity_num_max_elements: List[int],
        embedding_size: int,
        concat_self: bool = True,
        *,
        key: jax.Array,
        mxu_dtype=jnp.bfloat16,   # bf16 MXU operands on all gens (f32 accumulate)
    ):
        self.self_size = x_self_size if concat_self else 0
        self.entity_sizes = [int(k) for k in entity_sizes]
        self.n_per_group = [int(n) for n in entity_num_max_elements]
        self.embedding_size = int(embedding_size)
        self.concat_self = bool(concat_self)
        self.mxu_dtype = mxu_dtype

        S, H = self.self_size, self.embedding_size
        G = len(self.entity_sizes)
        self.G = G

        self.row_offsets = [0]
        for n in self.n_per_group:
            self.row_offsets.append(self.row_offsets[-1] + n)
        self.total_n = self.row_offsets[-1]

        self.col_offsets = [0]
        for k in self.entity_sizes:
            self.col_offsets.append(self.col_offsets[-1] + k)
        self.sum_k = self.col_offsets[-1]

        # Deterministic per-group Linear(S + K_g -> H) parameters
        # (Kaiming-style scaling). Self rows FIRST, matching the concat order
        # of the reference module.
        weights, biases = [], []
        for ent_size in self.entity_sizes:
            in_f = S + ent_size
            key, wk, bk = jax.random.split(key, 3)
            w = jax.random.normal(wk, (in_f, H), jnp.float32) * jnp.sqrt(2.0 / in_f)
            b = jax.random.normal(bk, (H,), jnp.float32) * 0.1
            weights.append(w)
            biases.append(b)
        self.weights_f32 = weights         # for the reference check
        self.biases_f32 = biases

        # Stacked kernel operands (built once, stored pre-cast to MXU dtype):
        #   w_self_stack : (S, G*H)   all groups' self-rows side by side
        #   w_ent_stack  : (ΣK, H)    all groups' entity-rows stacked vertically
        #   bias_row     : (1, G*H)   kept f32, added after f32 accumulation
        if self.concat_self:
            self.w_self_stack = jnp.concatenate(
                [w[:S, :] for w in weights], axis=1).astype(mxu_dtype)
        else:
            self.w_self_stack = None
        self.w_ent_stack = jnp.concatenate(
            [w[S:, :] for w in weights], axis=0).astype(mxu_dtype)
        self.bias_row = jnp.concatenate(biases, axis=0).reshape(1, G * H).astype(jnp.float32)

    def __call__(self, x_self: jax.Array, entities: List[jax.Array]) -> jax.Array:
        B = x_self.shape[0]
        H, S, G = self.embedding_size, self.self_size, self.G
        total_n, sum_k = self.total_n, self.sum_k
        out_dtype = x_self.dtype

        # Wrapper-side packing (layout plumbing stays outside the kernel):
        # block-column entity slab (B, total_n, ΣK) — rows of group g carry their
        # features in columns [col_off_g, col_off_g+K_g), zeros elsewhere, so the
        # single stacked (ΣK, H) weight projects every row with its own group's W.
        pieces = []
        for g, ent in enumerate(entities):
            k_g = self.entity_sizes[g]
            c0 = self.col_offsets[g]
            pieces.append(jnp.pad(ent.astype(self.mxu_dtype),
                                  ((0, 0), (0, 0), (c0, sum_k - c0 - k_g))))
        ent_packed = jnp.concatenate(pieces, axis=1)            # (B, total_n, ΣK)

        kernel = _make_kernel(self.n_per_group, self.row_offsets, H, self.concat_self)

        inputs, in_specs = [], []
        if self.concat_self:
            inputs.append(x_self.astype(self.mxu_dtype))
            in_specs.append(pl.BlockSpec((B, S), lambda b: (0, 0)))
        inputs.append(ent_packed)
        in_specs.append(pl.BlockSpec((1, total_n, sum_k), lambda b: (b, 0, 0)))
        if self.concat_self:
            inputs.append(self.w_self_stack)
            in_specs.append(pl.BlockSpec((S, G * H), lambda b: (0, 0)))
        inputs.append(self.w_ent_stack)
        in_specs.append(pl.BlockSpec((sum_k, H), lambda b: (0, 0)))
        inputs.append(self.bias_row)
        in_specs.append(pl.BlockSpec((1, G * H), lambda b: (0, 0)))

        # TODO(synk): at production sizes, tile batch*rows in >=512-row,
        # 8-aligned blocks (re-derive the tile for v7x's 64 MiB VMEM and set
        # vmem_limit_bytes), pick embedding_size as a multiple of 128 so output
        # stores are lane-dense, and lean on BlockSpec auto-pipelining /
        # pl.Buffered(3) on the entity operand.
        out = pl.pallas_call(
            kernel,
            out_shape=jax.ShapeDtypeStruct((B, total_n, H), out_dtype),
            grid=(B,),
            in_specs=in_specs,
            out_specs=pl.BlockSpec((1, total_n, H), lambda b: (b, 0, 0)),
            compiler_params=pltpu.CompilerParams(
                dimension_semantics=("parallel",)),
        )(*inputs)
        return out


# -------------------------------- reference --------------------------------

def _reference(module: EntityEmbeddingsPallas, x_self, entities, operand_dtype):
    """Pure-JAX reference mirroring the PyTorch forward; operands cast to
    `operand_dtype` (matmul), f32 accumulation, f32 bias/epilogue."""
    B = x_self.shape[0]
    outs = []
    for g, (n, ent) in enumerate(zip(module.n_per_group, entities)):
        w = module.weights_f32[g].astype(operand_dtype)
        b = module.biases_f32[g]
        if module.concat_self:
            exp_self = jnp.broadcast_to(
                x_self[:, None, :].astype(operand_dtype), (B, n, module.self_size))
            x = jnp.concatenate([exp_self, ent.astype(operand_dtype)], axis=2)
        else:
            x = ent.astype(operand_dtype)
        y = jnp.dot(x, w, preferred_element_type=jnp.float32) + b
        outs.append(y * jax.nn.sigmoid(y))
    return jnp.concatenate(outs, axis=1).astype(x_self.dtype)


# ----------------------------------- main -----------------------------------

if __name__ == "__main__":
    B = 2
    x_self_size = 8
    entity_sizes = [6, 10]
    entity_num_max_elements = [4, 3]
    embedding_size = 32

    key = jax.random.PRNGKey(0)
    key, k_self, k_e0, k_e1, k_params = jax.random.split(key, 5)

    x_self = jax.random.normal(k_self, (B, x_self_size), jnp.float32)
    entities = [
        jax.random.normal(k_e0, (B, entity_num_max_elements[0], entity_sizes[0]), jnp.float32),
        jax.random.normal(k_e1, (B, entity_num_max_elements[1], entity_sizes[1]), jnp.float32),
    ]
    expected_shape = (B, sum(entity_num_max_elements), embedding_size)

    # f32 MXU operands: tight check against the reference.
    mod_f32 = EntityEmbeddingsPallas(
        x_self_size, entity_sizes, entity_num_max_elements, embedding_size,
        concat_self=True, key=k_params, mxu_dtype=jnp.float32)
    out_f32 = jax.block_until_ready(mod_f32(x_self, entities))
    assert out_f32.shape == expected_shape, out_f32.shape
    ref_f32 = jax.block_until_ready(_reference(mod_f32, x_self, entities, jnp.float32))
    np.testing.assert_allclose(np.asarray(out_f32), np.asarray(ref_f32),
                               rtol=1e-5, atol=1e-5)

    # bf16 MXU operands (production default on all generations, f32 accumulate):
    # compared against a reference using identically bf16-cast operands.
    mod_bf16 = EntityEmbeddingsPallas(
        x_self_size, entity_sizes, entity_num_max_elements, embedding_size,
        concat_self=True, key=k_params, mxu_dtype=jnp.bfloat16)
    out_bf16 = jax.block_until_ready(mod_bf16(x_self, entities))
    assert out_bf16.shape == expected_shape, out_bf16.shape
    ref_bf16 = jax.block_until_ready(_reference(mod_bf16, x_self, entities, jnp.bfloat16))
    np.testing.assert_allclose(np.asarray(out_bf16), np.asarray(ref_bf16),
                               rtol=5e-3, atol=5e-3)

    print("KERNEL_OK")
</pallas_src>

<mosaic_0001>
module attributes {stable_mosaic.version = 11 : i64} {
  func.func @kernel(%arg0: i32, %arg1: memref<2x8xf32, #tpu.memory_space<vmem>>, %arg2: memref<1x7x16xf32, #tpu.memory_space<vmem>>, %arg3: memref<8x64xf32, #tpu.memory_space<vmem>>, %arg4: memref<16x32xf32, #tpu.memory_space<vmem>>, %arg5: memref<1x64xf32, #tpu.memory_space<vmem>>, %arg6: memref<1x7x32xf32, #tpu.memory_space<vmem>>) attributes {dimension_semantics = [#tpu.dimension_semantics<parallel>], iteration_bounds = array<i64: 2>, scalar_prefetch = 0 : i64, scratch_operands = 0 : i64, tpu.core_type = #tpu.core_type<tc>, window_params = [{pipeline_mode = #tpu.pipeline_mode<synchronous>, transform_indices = @transform_0, window_bounds = array<i64: 2, 8>}, {transform_indices = @transform_1, window_bounds = array<i64: 1, 7, 16>}, {pipeline_mode = #tpu.pipeline_mode<synchronous>, transform_indices = @transform_2, window_bounds = array<i64: 8, 64>}, {pipeline_mode = #tpu.pipeline_mode<synchronous>, transform_indices = @transform_3, window_bounds = array<i64: 16, 32>}, {pipeline_mode = #tpu.pipeline_mode<synchronous>, transform_indices = @transform_4, window_bounds = array<i64: 1, 64>}, {transform_indices = @transform_5, window_bounds = array<i64: 1, 7, 32>}]} {
    %c0 = arith.constant 0 : index
    %c0_0 = arith.constant 0 : index
    %c0_1 = arith.constant 0 : index
    %0 = vector.load %arg2[%c0, %c0_0, %c0_1] : memref<1x7x16xf32, #tpu.memory_space<vmem>>, vector<1x7x16xf32>
    %1 = vector.shape_cast %0 : vector<1x7x16xf32> to vector<7x16xf32>
    %c0_2 = arith.constant 0 : index
    %c0_3 = arith.constant 0 : index
    %2 = vector.load %arg4[%c0_2, %c0_3] : memref<16x32xf32, #tpu.memory_space<vmem>>, vector<16x32xf32>
    %cst = arith.constant dense<0.000000e+00> : vector<7x32xf32>
    %3 = tpu.matmul %1, %2, %cst {dimension_numbers = #tpu.dot_dimension_numbers<[1], [0], [0], [1], [0, 0, 1, 1], [], []>} : vector<7x16xf32>, vector<16x32xf32>, vector<7x32xf32> -> vector<7x32xf32>
    %4 = arith.index_cast %arg0 : i32 to index
    %c0_4 = arith.constant 0 : index
    %5 = vector.load %arg1[%4, %c0_4] : memref<2x8xf32, #tpu.memory_space<vmem>>, vector<1x8xf32>
    %c0_5 = arith.constant 0 : index
    %c0_6 = arith.constant 0 : index
    %6 = vector.load %arg3[%c0_5, %c0_6] : memref<8x64xf32, #tpu.memory_space<vmem>>, vector<8x64xf32>
    %cst_7 = arith.constant dense<0.000000e+00> : vector<1x64xf32>
    %7 = tpu.matmul %5, %6, %cst_7 {dimension_numbers = #tpu.dot_dimension_numbers<[1], [0], [0], [1], [0, 0, 1, 1], [], []>} : vector<1x8xf32>, vector<8x64xf32>, vector<1x64xf32> -> vector<1x64xf32>
    %c0_8 = arith.constant 0 : index
    %c0_9 = arith.constant 0 : index
    %8 = vector.load %arg5[%c0_8, %c0_9] : memref<1x64xf32, #tpu.memory_space<vmem>>, vector<1x64xf32>
    %9 = arith.addf %7, %8 : vector<1x64xf32>
    %10 = vector.extract_strided_slice %9 {offsets = [0, 0], sizes = [1, 32], strides = [1, 1]} : vector<1x64xf32> to vector<1x32xf32>
    %11 = vector.shape_cast %10 : vector<1x32xf32> to vector<1x32xf32>
    %12 = vector.broadcast %11 : vector<1x32xf32> to vector<4x32xf32>
    %13 = vector.extract_strided_slice %9 {offsets = [0, 32], sizes = [1, 32], strides = [1, 1]} : vector<1x64xf32> to vector<1x32xf32>
    %14 = vector.shape_cast %13 : vector<1x32xf32> to vector<1x32xf32>
    %15 = vector.broadcast %14 : vector<1x32xf32> to vector<3x32xf32>
    %16 = tpu.concatenate %12, %15 in 0 : vector<4x32xf32>, vector<3x32xf32> -> vector<7x32xf32>
    %17 = arith.addf %3, %16 : vector<7x32xf32>
    %18 = arith.negf %17 : vector<7x32xf32>
    %19 = math.exp %18 : vector<7x32xf32>
    %cst_10 = arith.constant 1.000000e+00 : f32
    %20 = vector.broadcast %cst_10 : f32 to vector<7x32xf32>
    %21 = arith.addf %20, %19 : vector<7x32xf32>
    %22 = arith.divf %20, %21 : vector<7x32xf32>
    %23 = arith.mulf %17, %22 : vector<7x32xf32>
    %24 = vector.shape_cast %23 : vector<7x32xf32> to vector<1x7x32xf32>
    %c0_11 = arith.constant 0 : index
    %c0_12 = arith.constant 0 : index
    %c0_13 = arith.constant 0 : index
    %25 = vector.load %arg6[%c0_11, %c0_12, %c0_13] : memref<1x7x32xf32, #tpu.memory_space<vmem>>, vector<1x7x32xf32>
    tpu.vector_store %arg6[%c0_11, %c0_12, %c0_13], %24 {strides = array<i32>} : memref<1x7x32xf32, #tpu.memory_space<vmem>>, vector<1x7x32xf32>,
    return
  }
  func.func @transform_0(%arg0: i32) -> (i32, i32) {
    %c0_i32 = arith.constant 0 : i32
    %c0_i32_0 = arith.constant 0 : i32
    %c0_i32_1 = arith.constant 0 : i32
    return %c0_i32, %c0_i32_0 : i32, i32
  }
  func.func @transform_1(%arg0: i32) -> (i32, i32, i32) {
    %c0_i32 = arith.constant 0 : i32
    %c0_i32_0 = arith.constant 0 : i32
    %c0_i32_1 = arith.constant 0 : i32
    return %arg0, %c0_i32, %c0_i32_0 : i32, i32, i32
  }
  func.func @transform_2(%arg0: i32) -> (i32, i32) {
    %c0_i32 = arith.constant 0 : i32
    %c0_i32_0 = arith.constant 0 : i32
    %c0_i32_1 = arith.constant 0 : i32
    return %c0_i32, %c0_i32_0 : i32, i32
  }
  func.func @transform_3(%arg0: i32) -> (i32, i32) {
    %c0_i32 = arith.constant 0 : i32
    %c0_i32_0 = arith.constant 0 : i32
    %c0_i32_1 = arith.constant 0 : i32
    return %c0_i32, %c0_i32_0 : i32, i32
  }
  func.func @transform_4(%arg0: i32) -> (i32, i32) {
    %c0_i32 = arith.constant 0 : i32
    %c0_i32_0 = arith.constant 0 : i32
    %c0_i32_1 = arith.constant 0 : i32
    return %c0_i32, %c0_i32_0 : i32, i32
  }
  func.func @transform_5(%arg0: i32) -> (i32, i32, i32) {
    %c0_i32 = arith.constant 0 : i32
    %c0_i32_0 = arith.constant 0 : i32
    %c0_i32_1 = arith.constant 0 : i32
    return %arg0, %c0_i32, %c0_i32_0 : i32, i32, i32
  }
}

</mosaic_0001>

<llo_original>
// kernel: tpu_custom_call.1
$region0: #{tpu_custom_call.1}
  #allocation0 [shape = 'u32[]', space=smem, size = 0x4, offset = 0x4, fixed_abs, tag = 'smem constant byte address 0x4 - core index']
  #allocation1 [shape = 'u32[144,128]{1,0:T(1,128)}', space=vmem, size = 0x12000, scoped, tag = 'internal scratch']
  %s0 = inlined_call_operand.vmem [shape: f32[2,8], index: 0, kind: input, shape index: {}]
  %s1 = inlined_call_operand.vmem [shape: f32[2,7,16], index: 1, kind: input, shape index: {}]
  %s2 = inlined_call_operand.vmem [shape: f32[8,64], index: 2, kind: input, shape index: {}]
  %s3 = inlined_call_operand.vmem [shape: f32[16,32], index: 3, kind: input, shape index: {}]
  %s4 = inlined_call_operand.vmem [shape: f32[1,64], index: 4, kind: input, shape index: {}]
  %s5 = inlined_call_operand.vmem [shape: f32[2,7,32], index: 5, kind: output, shape index: {}]
  %s6 = sld [smem:[#allocation0]]
  $region53: #{tpu_custom_call.1} parent=0
    _
  %s8 = ssub.s32 1, %s6
  %s9 = scalar_select 0, %s8, %s6
  loop: start=0, step=1, limit=4
  $region2: #{tpu_custom_call.1} parent=0 // loop_pre_header
    _
  $region3: #{tpu_custom_call.1} parent=0 // loop_header
    %s11 = sphi 0, %s15
    %p12 = scmp.ge.s32.totalorder %s11, 4
    %s19 = sphi 0, %s19
    %s21 = sphi 0, %s19
    %s22 = sphi 0, %s21
    %s36 = sphi 0, %s22
    %s42 = sphi 0, %s44
    %s45 = sphi 0, %s42
    %s46 = sphi 0, %s45
    %s62 = sphi 0, %s46
    %s66 = sphi 0, %s66
    %s68 = sphi 0, %s66
    %s69 = sphi 0, %s68
    %s83 = sphi 0, %s69
    %s87 = sphi 0, %s87
    %s89 = sphi 0, %s87
    %s90 = sphi 0, %s89
    %s104 = sphi 0, %s90
    %s108 = sphi 0, %s108
    %s110 = sphi 0, %s108
    %s111 = sphi 0, %s110
    %s125 = sphi 0, %s111
    %s131 = sphi 0, %s133
    %s134 = sphi 0, %s131
    %s135 = sphi 0, %s134
    %s151 = sphi 0, %s135
  $region4: #{tpu_custom_call.1} parent=0 // loop_header_branch
    %14 = sbr.rel (%p12) target = $region8
  $region5: #{tpu_custom_call.1} parent=0 // loop_body
    %s16 = ssub.s32 %s11, 1
    %s17 = ssub.s32 %s11, 2
    %s18 = sadd.s32 %s11, 1
    %s20 = sadd.s32 %s19, 1
    %p23 = scmp.eq.s32.totalorder %s11, 1
    %p24 = scmp.ne.s32.totalorder %s19, %s21
    %p25 = scmp.eq.s32.totalorder %s11, 0
    %p26 = por %p24, %p25
    %p27 = scmp.ne.s32.totalorder %s19, %s21
    %p28 = scmp.eq.s32.totalorder %s16, 1
    %p29 = por %p27, %p28
    %p30 = scmp.ne.s32.totalorder %s21, %s22
    %p31 = scmp.eq.s32.totalorder %s16, 0
    %p32 = por %p30, %p31
    %p33 = scmp.ne.s32.totalorder %s21, %s22
    %p34 = scmp.eq.s32.totalorder %s17, 1
    %p35 = por %p33, %p34
    %p37 = scmp.ne.s32.totalorder %s22, %s36
    %p38 = scmp.eq.s32.totalorder %s17, 0
    %p39 = por %p37, %p38
    %s40 = ssub.s32 %s11, %s18
    %p41 = scmp.eq.s32.totalorder %s40, 0
    %s43 = sadd.s32 %s42, 1
    %s44 = scalar_select %p41, %s42, %s43
    %p47 = pneg %p41
    %p48 = scmp.eq.s32.totalorder %s11, 1
    %p49 = por %p47, %p48
    %p50 = scmp.ne.s32.totalorder %s42, %s45
    %p51 = scmp.eq.s32.totalorder %s11, 0
    %p52 = por %p50, %p51
    %p53 = scmp.ne.s32.totalorder %s42, %s45
    %p54 = scmp.eq.s32.totalorder %s16, 1
    %p55 = por %p53, %p54
    %p56 = scmp.ne.s32.totalorder %s45, %s46
    %p57 = scmp.eq.s32.totalorder %s16, 0
    %p58 = por %p56, %p57
    %p59 = scmp.ne.s32.totalorder %s45, %s46
    %p60 = scmp.eq.s32.totalorder %s17, 1
    %p61 = por %p59, %p60
    %p63 = scmp.ne.s32.totalorder %s46, %s62
    %p64 = scmp.eq.s32.totalorder %s17, 0
    %p65 = por %p63, %p64
    %s67 = sadd.s32 %s66, 1
    %p70 = scmp.eq.s32.totalorder %s11, 1
    %p71 = scmp.ne.s32.totalorder %s66, %s68
    %p72 = scmp.eq.s32.totalorder %s11, 0
    %p73 = por %p71, %p72
    %p74 = scmp.ne.s32.totalorder %s66, %s68
    %p75 = scmp.eq.s32.totalorder %s16, 1
    %p76 = por %p74, %p75
    %p77 = scmp.ne.s32.totalorder %s68, %s69
    %p78 = scmp.eq.s32.totalorder %s16, 0
    %p79 = por %p77, %p78
    %p80 = scmp.ne.s32.totalorder %s68, %s69
    %p81 = scmp.eq.s32.totalorder %s17, 1
    %p82 = por %p80, %p81
    %p84 = scmp.ne.s32.totalorder %s69, %s83
    %p85 = scmp.eq.s32.totalorder %s17, 0
    %p86 = por %p84, %p85
    %s88 = sadd.s32 %s87, 1
    %p91 = scmp.eq.s32.totalorder %s11, 1
    %p92 = scmp.ne.s32.totalorder %s87, %s89
    %p93 = scmp.eq.s32.totalorder %s11, 0
    %p94 = por %p92, %p93
    %p95 = scmp.ne.s32.totalorder %s87, %s89
    %p96 = scmp.eq.s32.totalorder %s16, 1
    %p97 = por %p95, %p96
    %p98 = scmp.ne.s32.totalorder %s89, %s90
    %p99 = scmp.eq.s32.totalorder %s16, 0
    %p100 = por %p98, %p99
    %p101 = scmp.ne.s32.totalorder %s89, %s90
    %p102 = scmp.eq.s32.totalorder %s17, 1
    %p103 = por %p101, %p102
    %p105 = scmp.ne.s32.totalorder %s90, %s104
    %p106 = scmp.eq.s32.totalorder %s17, 0
    %p107 = por %p105, %p106
    %s109 = sadd.s32 %s108, 1
    %p112 = scmp.eq.s32.totalorder %s11, 1
    %p113 = scmp.ne.s32.totalorder %s108, %s110
    %p114 = scmp.eq.s32.totalorder %s11, 0
    %p115 = por %p113, %p114
    %p116 = scmp.ne.s32.totalorder %s108, %s110
    %p117 = scmp.eq.s32.totalorder %s16, 1
    %p118 = por %p116, %p117
    %p119 = scmp.ne.s32.totalorder %s110, %s111
    %p120 = scmp.eq.s32.totalorder %s16, 0
    %p121 = por %p119, %p120
    %p122 = scmp.ne.s32.totalorder %s110, %s111
    %p123 = scmp.eq.s32.totalorder %s17, 1
    %p124 = por %p122, %p123
    %p126 = scmp.ne.s32.totalorder %s111, %s125
    %p127 = scmp.eq.s32.totalorder %s17, 0
    %p128 = por %p126, %p127
    %s129 = ssub.s32 %s11, %s18
    %p130 = scmp.eq.s32.totalorder %s129, 0
    %s132 = sadd.s32 %s131, 1
    %s133 = scalar_select %p130, %s131, %s132
    %p136 = pneg %p130
    %p137 = scmp.eq.s32.totalorder %s11, 1
    %p138 = por %p136, %p137
    %p139 = scmp.ne.s32.totalorder %s131, %s134
    %p140 = scmp.eq.s32.totalorder %s11, 0
    %p141 = por %p139, %p140
    %p142 = scmp.ne.s32.totalorder %s131, %s134
    %p143 = scmp.eq.s32.totalorder %s16, 1
    %p144 = por %p142, %p143
    %p145 = scmp.ne.s32.totalorder %s134, %s135
    %p146 = scmp.eq.s32.totalorder %s16, 0
    %p147 = por %p145, %p146
    %p148 = scmp.ne.s32.totalorder %s134, %s135
    %p149 = scmp.eq.s32.totalorder %s17, 1
    %p150 = por %p148, %p149
    %p152 = scmp.ne.s32.totalorder %s135, %s151
    %p153 = scmp.eq.s32.totalorder %s17, 0
    %p154 = por %p152, %p153
    %p155 = scmp.le.s32.totalorder 1, %s11
    %p156 = scmp.lt.s32.totalorder %s11, 3
    %p157 = pnand %p155, %p156
    %p158 = pneg %p157
    // Predicated region
    $region9: #{tpu_custom_call.1} parent=5 // pred_check
      _
    $region10: #{tpu_custom_call.1} parent=5 // pred_check_branch
      %160 = sbr.rel (%p157) target = $region12
    $region11: #{tpu_custom_call.1} parent=5 // pred_region
      %s161 = ssub.s32 %s11, 1
      // Predicated region
      $region13: #{tpu_custom_call.1} parent=11 // pred_check
        %p162 = pneg %p32
      $region14: #{tpu_custom_call.1} parent=11 // pred_check_branch
        %164 = sbr.rel (%p162) target = $region16
      $region15: #{tpu_custom_call.1} parent=11 // pred_region
        _
      $region16: #{tpu_custom_call.1} parent=11 // pred_fallthru
        _
      // Predicated region
      $region17: #{tpu_custom_call.1} parent=11 // pred_check
        %p165 = pneg %p79
      $region18: #{tpu_custom_call.1} parent=11 // pred_check_branch
        %167 = sbr.rel (%p165) target = $region20
      $region19: #{tpu_custom_call.1} parent=11 // pred_region
        _
      $region20: #{tpu_custom_call.1} parent=11 // pred_fallthru
        _
      // Predicated region
      $region21: #{tpu_custom_call.1} parent=11 // pred_check
        %p168 = pneg %p100
      $region22: #{tpu_custom_call.1} parent=11 // pred_check_branch
        %170 = sbr.rel (%p168) target = $region24
      $region23: #{tpu_custom_call.1} parent=11 // pred_region
        _
      $region24: #{tpu_custom_call.1} parent=11 // pred_fallthru
        _
      // Predicated region
      $region25: #{tpu_custom_call.1} parent=11 // pred_check
        %p171 = pneg %p121
      $region26: #{tpu_custom_call.1} parent=11 // pred_check_branch
        %173 = sbr.rel (%p171) target = $region28
      $region27: #{tpu_custom_call.1} parent=11 // pred_region
        _
      $region28: #{tpu_custom_call.1} parent=11 // pred_fallthru
        _
    $region12: #{tpu_custom_call.1} parent=5 // pred_fallthru
      _
    %p174 = scmp.lt.s32.totalorder %s11, 2
    // Predicated region
    $region29: #{tpu_custom_call.1} parent=5 // pred_check
      %p175 = pneg %p174
    $region30: #{tpu_custom_call.1} parent=5 // pred_check_branch
      %177 = sbr.rel (%p175) target = $region32
    $region31: #{tpu_custom_call.1} parent=5 // pred_region
      // Predicated region
      $region33: #{tpu_custom_call.1} parent=31 // pred_check
        %p178 = pneg %p52
      $region34: #{tpu_custom_call.1} parent=31 // pred_check_branch
        %180 = sbr.rel (%p178) target = $region36
      $region35: #{tpu_custom_call.1} parent=31 // pred_region
        %p181 = scmp.lt.s32.totalorder %s11, 1
        %s182 = scalar_select %p181, %s11, 1
        %s183 = smul.addr %s182, 8
        %s184 = scalar_lea.vmem %s1, %s183
      $region36: #{tpu_custom_call.1} parent=31 // pred_fallthru
        _
    $region32: #{tpu_custom_call.1} parent=5 // pred_fallthru
      _
    %p185 = scmp.le.s32.totalorder 1, %s11
    %p186 = scmp.lt.s32.totalorder %s11, 3
    %p187 = pnand %p185, %p186
    %p188 = pneg %p187
    // Predicated region
    $region37: #{tpu_custom_call.1} parent=5 // pred_check
      _
    $region38: #{tpu_custom_call.1} parent=5 // pred_check_branch
      %190 = sbr.rel (%p187) target = $region40
    $region39: #{tpu_custom_call.1} parent=5 // pred_region
      %s191 = ssub.s32 %s11, 1
      %p192 = pneg %p32
      %p193 = pneg %p29
      %p194 = scmp.lt.s32.totalorder %s16, 1
      %s195 = scalar_select %p194, %s16, 1
      %s196 = smul.addr %s195, 8
      %s197 = scalar_lea.vmem %s1, %s196
      %p198 = pneg %p58
      %p199 = pneg %p55
      %p200 = pneg %p79
      %p201 = pneg %p76
      %p202 = pneg %p100
      %p203 = pneg %p97
      %p204 = pneg %p121
      %p205 = pneg %p118
      %p206 = pneg %p147
      %p207 = pneg %p144
      %p208 = scmp.lt.s32.totalorder %s16, 1
      %s209 = scalar_select %p208, %s16, 1
      %s210 = smul.addr %s209, 8
      %s211 = scalar_lea.vmem %s5, %s210
      %p212 = scmp.lt.s32.totalorder %s16, 1
      %s213 = scalar_select %p212, %s16, 1
      %s214 = smul.addr %s213, 8
      %s215 = scalar_lea.vmem %s1, %s214
      %p216 = scmp.lt.s32.totalorder %s16, 1
      %s217 = scalar_select %p216, %s16, 1
      %s218 = smul.addr %s217, 8
      %s219 = scalar_lea.vmem %s5, %s218
      %v220 = vld [vmem:[%s215] sm:$0x7f]
      %v221 = vld [vmem:[%s3] sm:$0xff]
      %v222 = vld [vmem:[%s3 + $0x8] sm:$0xff]
      %s223 = scalar_lea.vmem %s0, %s16
      %v224 = vld [vmem:[%s223] sm:$0x1]
      %v225 = vld [vmem:[%s2] sm:$0xff]
      %v226 = vld [vmem:[%s4] sm:$0x1]
      %vm227 = vcmask 64512
      %v229 = vsel %vm227, %v224, 0
      %231 = vmatprep.subr.mxu0 0.0
      %232 = vmatpush1.msra.mxu0 %v225
      %233 = vmatprep.subr.mxu0 0.0
      %234 = vmatpush1.msra.mxu0 0.0
      %235 = vmatprep.subr.mxu0 0.0
      %236 = vmatpush1.msra.mxu0 0.0
      %237 = vmatprep.subr.mxu0 0.0
      %238 = vmatpush1.msra.mxu0 0.0
      %239 = vmatprep.subr.mxu0 0.0
      %240 = vmatpush1.msra.mxu0 0.0
      %241 = vmatprep.subr.mxu0 0.0
      %242 = vmatpush1.msra.mxu0 0.0
      %243 = vmatprep.subr.mxu0 0.0
      %244 = vmatpush1.msra.mxu0 0.0
      %245 = vmatprep.subr.mxu0 0.0
      %246 = vmatpush1.msra.mxu0 0.0
      %247 = vmatprep.subr.mxu0 0.0
      %248 = vmatpush1.msra.mxu0 0.0
      %249 = vmatprep.subr.mxu0 0.0
      %250 = vmatpush1.msra.mxu0 0.0
      %251 = vmatprep.subr.mxu0 0.0
      %252 = vmatpush1.msra.mxu0 0.0
      %253 = vmatprep.subr.mxu0 0.0
      %254 = vmatpush1.msra.mxu0 0.0
      %255 = vmatprep.subr.mxu0 0.0
      %256 = vmatpush1.msra.mxu0 0.0
      %257 = vmatprep.subr.mxu0 0.0
      %258 = vmatpush1.msra.mxu0 0.0
      %259 = vmatprep.subr.mxu0 0.0
      %260 = vmatpush1.msra.mxu0 0.0
      %261 = vmatprep.subr.mxu0 0.0
      %262 = vmatpush1.msra.mxu0 0.0
      %263 = vmatprep.subr.mxu0 0.0
      %264 = vmatpush1.msra.mxu0 0.0
      %265 = vmatprep.subr.mxu0 0.0
      %266 = vmatpush1.msra.mxu0 0.0
      %267 = vmatprep.subr.mxu0 0.0
      %268 = vmatpush1.msra.mxu0 0.0
      %269 = vmatprep.subr.mxu0 0.0
      %270 = vmatpush1.msra.mxu0 0.0
      %271 = vmatprep.subr.mxu0 0.0
      %272 = vmatpush1.msra.mxu0 0.0
      %273 = vmatprep.subr.mxu0 0.0
      %274 = vmatpush1.msra.mxu0 0.0
      %275 = vmatprep.subr.mxu0 0.0
      %276 = vmatpush1.msra.mxu0 0.0
      %277 = vmatprep.subr.mxu0 0.0
      %278 = vmatpush1.msra.mxu0 0.0
      %279 = vmatprep.subr.mxu0 0.0
      %280 = vmatpush1.msra.mxu0 0.0
      %281 = vmatprep.subr.mxu0 0.0
      %282 = vmatpush1.msra.mxu0 0.0
      %283 = vmatprep.subr.mxu0 0.0
      %284 = vmatpush1.msra.mxu0 0.0
      %285 = vmatprep.subr.mxu0 0.0
      %286 = vmatpush1.msra.mxu0 0.0
      %287 = vmatprep.subr.mxu0 0.0
      %288 = vmatpush1.msra.mxu0 0.0
      %289 = vmatprep.subr.mxu0 0.0
      %290 = vmatpush1.msra.mxu0 0.0
      %291 = vmatprep.subr.mxu0 0.0
      %292 = vmatpush1.msra.mxu0 0.0
      %293 = vmatprep.subr.mxu0 0.0
      %294 = vmatpush1.msra.mxu0 0.0
      %295 = vmatprep.mubr.f32.mxu0 0.0
      %296 = vmatmul.mubr.f32.gmra.mrb[0].mxu0 %v229
      %v297 = vpop.f32.mrb[0].mxu0
      %v298 = vadd.f32 %v226, %v297
      %v299 = vpop.f32.mrb[0].mxu0
      %300 = vdwg.mxu0
      %v301 = vlaneseq
      %v302 = vshrl.u32 %v301, 7
      %v303 = vsub.s32 0, %v302
      %v304 = vrot.slane %v298, %v303
      %306 = vrot.lane.b32.xlu0 %v304, 96
      %v307 = vpop.permute.xlu0 %306
      %vm309 = vcmask 1043456
      %v310 = vsel %vm309, %v304, %v307
      %vm311 = vcmask 130048
      %v313 = vsel %vm311, %v220, 0
      %315 = vmatprep.subr.mxu0 0.0
      %316 = vmatpush1.msra.mxu0 %v221
      %317 = vmatprep.subr.mxu0 0.0
      %318 = vmatpush1.msra.mxu0 %v222
      %319 = vmatprep.subr.mxu0 0.0
      %320 = vmatpush1.msra.mxu0 0.0
      %321 = vmatprep.subr.mxu0 0.0
      %322 = vmatpush1.msra.mxu0 0.0
      %323 = vmatprep.subr.mxu0 0.0
      %324 = vmatpush1.msra.mxu0 0.0
      %325 = vmatprep.subr.mxu0 0.0
      %326 = vmatpush1.msra.mxu0 0.0
      %327 = vmatprep.subr.mxu0 0.0
      %328 = vmatpush1.msra.mxu0 0.0
      %329 = vmatprep.subr.mxu0 0.0
      %330 = vmatpush1.msra.mxu0 0.0
      %331 = vmatprep.subr.mxu0 0.0
      %332 = vmatpush1.msra.mxu0 0.0
      %333 = vmatprep.subr.mxu0 0.0
      %334 = vmatpush1.msra.mxu0 0.0
      %335 = vmatprep.subr.mxu0 0.0
      %336 = vmatpush1.msra.mxu0 0.0
      %337 = vmatprep.subr.mxu0 0.0
      %338 = vmatpush1.msra.mxu0 0.0
      %339 = vmatprep.subr.mxu0 0.0
      %340 = vmatpush1.msra.mxu0 0.0
      %341 = vmatprep.subr.mxu0 0.0
      %342 = vmatpush1.msra.mxu0 0.0
      %343 = vmatprep.subr.mxu0 0.0
      %344 = vmatpush1.msra.mxu0 0.0
      %345 = vmatprep.subr.mxu0 0.0
      %346 = vmatpush1.msra.mxu0 0.0
      %347 = vmatprep.subr.mxu0 0.0
      %348 = vmatpush1.msra.mxu0 0.0
      %349 = vmatprep.subr.mxu0 0.0
      %350 = vmatpush1.msra.mxu0 0.0
      %351 = vmatprep.subr.mxu0 0.0
      %352 = vmatpush1.msra.mxu0 0.0
      %353 = vmatprep.subr.mxu0 0.0
      %354 = vmatpush1.msra.mxu0 0.0
      %355 = vmatprep.subr.mxu0 0.0
      %356 = vmatpush1.msra.mxu0 0.0
      %357 = vmatprep.subr.mxu0 0.0
      %358 = vmatpush1.msra.mxu0 0.0
      %359 = vmatprep.subr.mxu0 0.0
      %360 = vmatpush1.msra.mxu0 0.0
      %361 = vmatprep.subr.mxu0 0.0
      %362 = vmatpush1.msra.mxu0 0.0
      %363 = vmatprep.subr.mxu0 0.0
      %364 = vmatpush1.msra.mxu0 0.0
      %365 = vmatprep.subr.mxu0 0.0
      %366 = vmatpush1.msra.mxu0 0.0
      %367 = vmatprep.subr.mxu0 0.0
      %368 = vmatpush1.msra.mxu0 0.0
      %369 = vmatprep.subr.mxu0 0.0
      %370 = vmatpush1.msra.mxu0 0.0
      %371 = vmatprep.subr.mxu0 0.0
      %372 = vmatpush1.msra.mxu0 0.0
      %373 = vmatprep.subr.mxu0 0.0
      %374 = vmatpush1.msra.mxu0 0.0
      %375 = vmatprep.subr.mxu0 0.0
      %376 = vmatpush1.msra.mxu0 0.0
      %377 = vmatprep.subr.mxu0 0.0
      %378 = vmatpush1.msra.mxu0 0.0
      %379 = vmatprep.mubr.f32.mxu0 0.0
      %380 = vmatmul.mubr.f32.gmra.mrb[0].mxu0 %v313
      %v381 = vpop.f32.mrb[0].mxu0
      %v382 = vadd.f32 %v310, %v381
      %v383 = vpop.f32.mrb[0].mxu0
      %384 = vdwg.mxu0
      %v385 = vxor.u32 %v382, 2147483648
      %v386 = vmul.f32 %v385, 1.442695
      %v387 = vpow.pop %v386
      %v388 = vadd.f32 %v387, 1.0
      %v389 = vrcp.pop %v388
      %v390 = vmul.f32 1.0, %v389
      %v391 = vmul.f32 %v382, %v390
      %vm392 = vcmask 260096
      %393 = vst.msk [vmem:[%s219] sm:$0x7f] %vm392, %v391
      %p394 = scmp.lt.s32.totalorder %s16, 1
      %s395 = scalar_select %p394, %s16, 1
      %s396 = smul.addr %s395, 8
      %s397 = scalar_lea.vmem %s5, %s396
      // Predicated region
      $region41: #{tpu_custom_call.1} parent=39 // pred_check
        %p398 = pneg %p144
      $region42: #{tpu_custom_call.1} parent=39 // pred_check_branch
        %400 = sbr.rel (%p398) target = $region44
      $region43: #{tpu_custom_call.1} parent=39 // pred_region
        _
      $region44: #{tpu_custom_call.1} parent=39 // pred_fallthru
        _
    $region40: #{tpu_custom_call.1} parent=5 // pred_fallthru
      _
    %p401 = scmp.le.s32.totalorder 2, %s11
    // Predicated region
    $region45: #{tpu_custom_call.1} parent=5 // pred_check
      %p402 = pneg %p401
    $region46: #{tpu_custom_call.1} parent=5 // pred_check_branch
      %404 = sbr.rel (%p402) target = $region48
    $region47: #{tpu_custom_call.1} parent=5 // pred_region
      %s405 = ssub.s32 %s11, 2
      // Predicated region
      $region49: #{tpu_custom_call.1} parent=47 // pred_check
        %p406 = pneg %p150
      $region50: #{tpu_custom_call.1} parent=47 // pred_check_branch
        %408 = sbr.rel (%p406) target = $region52
      $region51: #{tpu_custom_call.1} parent=47 // pred_region
        %p409 = scmp.lt.s32.totalorder %s17, 1
        %s410 = scalar_select %p409, %s17, 1
        %s411 = smul.addr %s410, 8
        %s412 = scalar_lea.vmem %s5, %s411
      $region52: #{tpu_custom_call.1} parent=47 // pred_fallthru
        _
    $region48: #{tpu_custom_call.1} parent=5 // pred_fallthru
      _
  $region6: #{tpu_custom_call.1} parent=0 // loop_footer
    %s15 = sadd.s32 1, %s11
  $region7: #{tpu_custom_call.1} parent=0 // loop_footer_branch
    %10 = sbr.rel target = $region3
  $region8: #{tpu_custom_call.1} parent=0 // loop_exit
    _

</llo_original>
